<compile_context>
chip_gen: v6e
topology: v6e:2x2x1
jax: 0.10.0
libtpu: 0.0.40
codegen_flags: <defaults>
</compile_context>

<pallas_src>
from typing import Dict, Literal, Optional, Union

import jax
import jax.numpy as jnp
from jax.experimental import pallas as pl
from jax.experimental.pallas import tpu as pltpu


# ----------------------------------------------------------------------------
# Synthetic "Graph" container (stand-in for graphlearn Graph / UnionGraph).
# ----------------------------------------------------------------------------
class Graph:
    def __init__(self, node_features, edge_features, graph_features):
        self.node_features = node_features    # [N_nodes, F] or dict[str, array]
        self.edge_features = edge_features    # [N_edges, F] or dict[str, array]
        self.graph_features = graph_features  # [N_graphs, F] or dict[str, array]


# ----------------------------------------------------------------------------
# Pallas kernel: tiled extraction copy of the selected feature tensor.
# ----------------------------------------------------------------------------
def _extract_kernel(x_ref, o_ref):
    # Pure extraction: output tile == input tile (exact dtype/value passthrough).
    o_ref[...] = x_ref[...]


def _vmem_capacity_bytes() -> int:
    """Per-TensorCore VMEM capacity; conservative fallback = v7x's 64 MiB."""
    try:
        return int(pltpu.get_tpu_info().vmem_capacity_bytes)
    except Exception:
        return 64 * 1024 * 1024


def _block_budget_bytes() -> int:
    """Per-block VMEM budget, generation aware.

    On 64 MiB-VMEM parts (v7x) keep blocks at ~4 MiB so the 4 double-buffered
    live buffers stay well under half of VMEM; on 128 MiB parts allow 8 MiB.
    Either way the ~0.35 us/step pipeline overhead is fully amortized.
    """
    cap = _vmem_capacity_bytes()
    if cap <= (64 << 20):
        return max(min(cap // 16, 4 << 20), 1 << 20)
    return max(min(cap // 8, 8 << 20), 1 << 20)


def _sublane_multiple(dtype) -> int:
    """Minimum row-tile multiple for dense sublane packing of this dtype."""
    bits = jnp.dtype(dtype).itemsize * 8
    if bits >= 32:
        return 8
    if bits == 16:
        return 16
    return 32  # int8 / fp8


def _pick_lane_width(total_elems: int) -> Optional[int]:
    """Widest lane-dense (multiple-of-128) width that exactly divides total."""
    for width in (4096, 2048, 1024, 512, 256, 128):
        if total_elems % width == 0:
            return width
    return None


def _materialize(x, *, donate: bool = False) -> jax.Array:
    """Physical extraction copy of the selected feature tensor (opt-in)."""
    if not isinstance(x, jax.Array):
        x = jnp.asarray(x)
    if x.size == 0:
        return x

    orig_shape = x.shape
    dtype = x.dtype
    item = jnp.dtype(dtype).itemsize
    total = x.size
    total_bytes = total * item

    # Present a lane-dense slab: free reshape of the contiguous row-major
    # array to a wide, multiple-of-128 last dim => unmasked dense stores and
    # the (8,128) BlockSpec constraint is satisfied regardless of F.
    lane_width = _pick_lane_width(total)
    if lane_width is not None:
        slab = x.reshape(total // lane_width, lane_width)
    elif x.ndim == 2:
        slab = x
    else:
        # TODO(synk): element counts not divisible by 128 and not already 2-D
        # fall back to a (1, total) layout (masked tail stores on the last tile).
        slab = x.reshape(1, total)

    rows, cols = slab.shape
    sub = _sublane_multiple(dtype)
    budget = _block_budget_bytes()

    # Lane tile: full last dim whenever a sublane-multiple of rows at full
    # width fits the budget; otherwise tile the last dim in multiples of 128
    # (prevents VMEM blow-up for very wide, non-flattenable feature dims).
    if cols <= 128 or cols * item * sub <= budget:
        tc = cols
    else:
        tc = max(((budget // (sub * item)) // 128) * 128, 128)
        tc = min(tc, cols)

    # Row tile: as many sublane-multiples as fit the budget; single full block
    # when everything fits (no artificial multi-step split on 1-TC parts).
    tr = max(((budget // (tc * item)) // sub) * sub, sub)
    if tr >= rows:
        tr = rows

    grid = (pl.cdiv(rows, tr), pl.cdiv(cols, tc))
    block_bytes = tr * tc * item
    cap = _vmem_capacity_bytes()
    vmem_limit = min(int(0.75 * cap), max(16 << 20, 4 * block_bytes + (2 << 20)))

    out = pl.pallas_call(
        _extract_kernel,
        out_shape=jax.ShapeDtypeStruct((rows, cols), dtype),
        grid_spec=pltpu.PrefetchScalarGridSpec(
            num_scalar_prefetch=0,
            grid=grid,
            in_specs=[pl.BlockSpec((tr, tc), lambda i, j: (i, j))],
            out_specs=pl.BlockSpec((tr, tc), lambda i, j: (i, j)),
        ),
        compiler_params=pltpu.CompilerParams(
            dimension_semantics=("parallel", "parallel"),
            vmem_limit_bytes=vmem_limit,
        ),
        cost_estimate=pl.CostEstimate(
            flops=0, transcendentals=0, bytes_accessed=2 * total_bytes),
        # Alias only when the caller actually donates the input buffer;
        # otherwise XLA would insert a defensive copy before the call.
        input_output_aliases=({0: 0} if donate else {}),
    )(slab)

    return out.reshape(orig_shape)


# ----------------------------------------------------------------------------
# FeatureExtractor wrapper: mirrors the PyTorch module's forward semantics.
# ----------------------------------------------------------------------------
class FeatureExtractor:
    def __init__(self, attribute: Literal['node', 'edge', 'graph'],
                 key: Optional[str] = None, *,
                 materialize: bool = False, donate: bool = False):
        self.attribute = attribute
        self.key = key
        self.materialize = materialize
        self.donate = donate

    def __call__(self, batch: Graph) -> Union[jax.Array, Dict[str, jax.Array]]:
        # Attribute / dict-key selection is Python-level dispatch (no tensor
        # math).  Default path returns the selected object unchanged — the
        # exact view semantics of the PyTorch module, zero HBM traffic.
        attr = getattr(batch, f"{self.attribute}_features")
        if self.key:
            attr = attr[self.key]
        if not self.materialize:
            return attr
        if isinstance(attr, dict):
            # TODO(synk): batch leaves above a size threshold into a single
            # multi-spec pallas_call to amortize launch/pipeline setup cost.
            return {k: _materialize(v, donate=self.donate) for k, v in attr.items()}
        return _materialize(attr, donate=self.donate)


# ----------------------------------------------------------------------------
# Demo / smoke test (small deterministic shapes).
# ----------------------------------------------------------------------------
if __name__ == "__main__":
    key = jax.random.PRNGKey(0)
    k_node, k_edge, k_graph, k_aux = jax.random.split(key, 4)

    num_nodes, num_edges, num_graphs = 64, 96, 2
    node_feat, edge_feat, graph_feat = 128, 64, 32

    # f32 node features: total divisible by 128 -> lane-dense slab path.
    node_features = jax.random.normal(k_node, (num_nodes, node_feat), dtype=jnp.float32)
    # bf16 edge features: exercises sub-32-bit sublane packing on the slab path.
    edge_features = jax.random.normal(
        k_edge, (num_edges, edge_feat), dtype=jnp.float32).astype(jnp.bfloat16)
    # Tiny dict-valued graph features: exercises the 2-D fallback (full-dim block).
    graph_features = {
        "global": jax.random.normal(k_graph, (num_graphs, graph_feat), dtype=jnp.float32),
        "aux": jax.random.normal(k_aux, (num_graphs, graph_feat), dtype=jnp.float32),
    }

    batch = Graph(node_features, edge_features, graph_features)

    # 1) Default path: pure selection, no kernel, no copy (PyTorch view semantics).
    view_extractor = FeatureExtractor("node")
    out_view = view_extractor(batch)
    assert out_view is node_features

    # 2) Opt-in materialization: Pallas extraction copy (lane-dense slab path).
    node_extractor = FeatureExtractor("node", materialize=True)
    out_nodes = jax.block_until_ready(node_extractor(batch))
    assert out_nodes.shape == (num_nodes, node_feat)
    assert out_nodes.dtype == node_features.dtype
    assert jnp.array_equal(out_nodes, node_features)

    # 3) bf16 materialization (packed sublanes, slab path).
    edge_extractor = FeatureExtractor("edge", materialize=True)
    out_edges = jax.block_until_ready(edge_extractor(batch))
    assert out_edges.dtype == jnp.bfloat16
    assert jnp.array_equal(out_edges, edge_features)

    # 4) Dict key selection + materialization (2-D fallback path).
    graph_extractor = FeatureExtractor("graph", key="global", materialize=True)
    out_graph = jax.block_until_ready(graph_extractor(batch))
    assert out_graph.shape == (num_graphs, graph_feat)
    assert jnp.array_equal(out_graph, graph_features["global"])

    # 5) Dict attribute without a key.
    dict_extractor = FeatureExtractor("graph", materialize=True)
    out_dict = dict_extractor(batch)
    out_dict = {k: jax.block_until_ready(v) for k, v in out_dict.items()}
    assert set(out_dict) == {"global", "aux"}
    assert jnp.array_equal(out_dict["aux"], graph_features["aux"])

    print("KERNEL_OK")
</pallas_src>

<mosaic_0001>
module attributes {stable_mosaic.version = 11 : i64} {
  func.func @_extract_kernel(%arg0: i32, %arg1: i32, %arg2: memref<2x4096xf32, #tpu.memory_space<vmem>>, %arg3: memref<2x4096xf32, #tpu.memory_space<vmem>>) attributes {dimension_semantics = [#tpu.dimension_semantics<parallel>, #tpu.dimension_semantics<parallel>], iteration_bounds = array<i64: 1, 1>, scalar_prefetch = 0 : i64, scratch_operands = 0 : i64, tpu.core_type = #tpu.core_type<tc>, window_params = [{transform_indices = @transform_0, window_bounds = array<i64: 2, 4096>}, {transform_indices = @transform_1, window_bounds = array<i64: 2, 4096>}]} {
    %c0 = arith.constant 0 : index
    %c0_0 = arith.constant 0 : index
    %0 = vector.load %arg2[%c0, %c0_0] : memref<2x4096xf32, #tpu.memory_space<vmem>>, vector<2x4096xf32>
    %c0_1 = arith.constant 0 : index
    %c0_2 = arith.constant 0 : index
    %1 = vector.load %arg3[%c0_1, %c0_2] : memref<2x4096xf32, #tpu.memory_space<vmem>>, vector<2x4096xf32>
    tpu.vector_store %arg3[%c0_1, %c0_2], %0 {strides = array<i32>} : memref<2x4096xf32, #tpu.memory_space<vmem>>, vector<2x4096xf32>,
    return
  }
  func.func @transform_0(%arg0: i32, %arg1: i32) -> (i32, i32) {
    %c0_i32 = arith.constant 0 : i32
    return %arg0, %arg1 : i32, i32
  }
  func.func @transform_1(%arg0: i32, %arg1: i32) -> (i32, i32) {
    %c0_i32 = arith.constant 0 : i32
    return %arg0, %arg1 : i32, i32
  }
}

</mosaic_0001>

<llo_original>
// kernel: tpu_custom_call.1
$region0: #{tpu_custom_call.1}
  #allocation0 [shape = 'u32[]', space=smem, size = 0x4, offset = 0x4, fixed_abs, tag = 'smem constant byte address 0x4 - core index']
  #allocation1 [shape = 'u32[144,128]{1,0:T(1,128)}', space=vmem, size = 0x12000, scoped, tag = 'internal scratch']
  %s0 = inlined_call_operand.hbm [shape: f32[2,4096], index: 0, kind: input, shape index: {}]
  %s1 = inlined_call_operand.hbm [shape: f32[2,4096], index: 1, kind: output, shape index: {}]
  %s2 = sld [smem:[#allocation0]]
  $region18: #{tpu_custom_call.1} parent=0
    _
  %s4 = ssub.s32 1, %s2
  %s5 = scalar_select 0, %s4, %s2
  $region1: #{tpu_custom_call.1} parent=0
    #allocation2 [shape = 'u8[32768]{0}', space=vmem, size = 0x8000, scoped, tag = 'input window, operand 0, single buffered']
    #allocation3 [shape = 's32[1]{0}', space=sflag, size = 0x4, scoped, tag = 'scoped memory for tpu_custom_call.1']
    #allocation4 [shape = 's32[1]{0}', space=sflag, size = 0x4, scoped, tag = 'scoped memory for tpu_custom_call.1']
    #allocation5 [shape = 'u8[32768]{0}', space=vmem, size = 0x8000, scoped, tag = 'output window, operand 0, single buffered']
    %6 = vsyncpa [#allocation3], 0
    %7 = vsyncpa [#allocation4], 0
    // Predicated region
    $region2: #{tpu_custom_call.1} parent=1 // pred_check
      _
    $region3: #{tpu_custom_call.1} parent=1 // pred_check_branch
      %9 = sbr.rel (0) target = $region5
    $region4: #{tpu_custom_call.1} parent=1 // pred_region
      %s11 = ssub.s32 1024, 1024
      %12 = vsyncadd [#allocation3], %s11
      %s14 = sshll.u32 [#allocation2], 4
      %s15 = int_to_ptr.vmem [resolvable:$true] %s14
      %17 = dma.hbm_to_vmem [thread:$0]  %s0, 1024, %s15, [#allocation3]
    $region5: #{tpu_custom_call.1} parent=1 // pred_fallthru
      _
    // Predicated region
    $region6: #{tpu_custom_call.1} parent=1 // pred_check
      _
    $region7: #{tpu_custom_call.1} parent=1 // pred_check_branch
      %19 = sbr.rel (0) target = $region9
    $region8: #{tpu_custom_call.1} parent=1 // pred_region
      %20 = dma.done [#allocation3], 1024
    $region9: #{tpu_custom_call.1} parent=1 // pred_fallthru
      _
    %v21 = vld [vmem:[#allocation2] sm:$0xff]
    %v22 = vld [vmem:[#allocation2 + $0x8] sm:$0xff]
    %v23 = vld [vmem:[#allocation2 + $0x10] sm:$0xff]
    %v24 = vld [vmem:[#allocation2 + $0x18] sm:$0xff]
    %v25 = vld [vmem:[#allocation2 + $0x20] sm:$0xff]
    %v26 = vld [vmem:[#allocation2 + $0x28] sm:$0xff]
    %v27 = vld [vmem:[#allocation2 + $0x30] sm:$0xff]
    %v28 = vld [vmem:[#allocation2 + $0x38] sm:$0xff]
    %29 = vst [vmem:[#allocation5] sm:$0xff] %v21
    %30 = vst [vmem:[#allocation5 + $0x8] sm:$0xff] %v22
    %31 = vst [vmem:[#allocation5 + $0x10] sm:$0xff] %v23
    %32 = vst [vmem:[#allocation5 + $0x18] sm:$0xff] %v24
    %33 = vst [vmem:[#allocation5 + $0x20] sm:$0xff] %v25
    %34 = vst [vmem:[#allocation5 + $0x28] sm:$0xff] %v26
    %35 = vst [vmem:[#allocation5 + $0x30] sm:$0xff] %v27
    %36 = vst [vmem:[#allocation5 + $0x38] sm:$0xff] %v28
    // Predicated region
    $region10: #{tpu_custom_call.1} parent=1 // pred_check
      _
    $region11: #{tpu_custom_call.1} parent=1 // pred_check_branch
      %38 = sbr.rel (0) target = $region13
    $region12: #{tpu_custom_call.1} parent=1 // pred_region
      %s40 = ssub.s32 1024, 1024
      %41 = vsyncadd [#allocation4], %s40
      %s43 = sshll.u32 [#allocation5], 4
      %s44 = int_to_ptr.vmem [resolvable:$true] %s43
      %46 = dma.vmem_to_hbm [thread:$0]  %s44, 1024, %s1, [#allocation4]
    $region13: #{tpu_custom_call.1} parent=1 // pred_fallthru
      _
    // Predicated region
    $region14: #{tpu_custom_call.1} parent=1 // pred_check
      _
    $region15: #{tpu_custom_call.1} parent=1 // pred_check_branch
      %48 = sbr.rel (0) target = $region17
    $region16: #{tpu_custom_call.1} parent=1 // pred_region
      %49 = dma.done [#allocation4], 1024
    $region17: #{tpu_custom_call.1} parent=1 // pred_fallthru
      _
    %50 = vsyncpa [#allocation3], 1
    %51 = vsyncpa [#allocation4], 1

</llo_original>
